<compile_context>
chip_gen: v6e
topology: v6e:2x2x1
jax: 0.10.0
libtpu: 0.0.40
codegen_flags: <defaults>
</compile_context>

<pallas_src>
import jax
import jax.numpy as jnp
from jax.experimental import pallas as pl
from jax.experimental.pallas import tpu as pltpu


def _round_up(x: int, m: int) -> int:
    return ((x + m - 1) // m) * m


def _vmem_budget_bytes() -> int:
    """Per-generation VMEM budget (leave headroom for compiler scratch)."""
    cap = 64 * 1024 * 1024
    try:
        info = pltpu.get_tpu_info()
        cap = int(getattr(info, "vmem_capacity_bytes", cap))
    except Exception:
        pass
    # v5e/v6e (128 MiB) -> 96 MiB; v7x (64 MiB/TC) -> 48 MiB; never below 32 MiB.
    return max(32 * 1024 * 1024, min((cap * 3) // 4, 96 * 1024 * 1024))


# ---------------------------------------------------------------------------
# Fast path: weight + bias resident in VMEM, single K pass, grid = (M, N)
# ---------------------------------------------------------------------------
def _linear_resident_kernel(x_ref, w_ref, b_ref, o_ref):
    # x_ref: (tm, d_in_p)       bf16  activation tile for this M block
    # w_ref: (d_in_p, d_out_p)  bf16  full weight, resident (DMA'd once)
    # b_ref: (1, d_out_p)       f32   full bias, resident
    # o_ref: (tm, tn)           f32   output tile
    tn = o_ref.shape[1]
    n0 = pl.multiple_of(pl.program_id(1) * tn, 128)
    acc = jnp.dot(x_ref[...], w_ref[:, pl.ds(n0, tn)],
                  preferred_element_type=jnp.float32)
    o_ref[...] = (acc + b_ref[:, pl.ds(n0, tn)]).astype(o_ref.dtype)


# ---------------------------------------------------------------------------
# Fallback path: streamed tiles, (M, N, K) grid with f32 accumulator scratch
# ---------------------------------------------------------------------------
def _linear_tiled_kernel(x_ref, w_ref, b_ref, o_ref, acc_ref):
    @pl.when(pl.program_id(2) == 0)
    def _init():
        acc_ref[...] = jnp.zeros_like(acc_ref)

    acc_ref[...] += jnp.dot(x_ref[...], w_ref[...],
                            preferred_element_type=jnp.float32)

    @pl.when(pl.program_id(2) == pl.num_programs(2) - 1)
    def _finalize():
        o_ref[...] = (acc_ref[...] + b_ref[...]).astype(o_ref.dtype)


def _pad_cast_inputs(x, weight, bias, B_p, d_in_p, d_out_p):
    B, d_in = x.shape
    d_out = weight.shape[0]
    # One fused pad + bf16 cast pass over the activations. K padding MUST be
    # zeros (feeds the contraction); M padding is free within the same pass.
    x_p = jnp.pad(x, ((0, B_p - B), (0, d_in_p - d_in))).astype(jnp.bfloat16)
    # Weight: pad + cast + transpose once -> (d_in_p, d_out_p) so the MXU sees
    # a standard (K, N) RHS with no per-tile transpose.
    w_p = jnp.pad(weight, ((0, d_out_p - d_out), (0, d_in_p - d_in)))
    w_p = w_p.astype(jnp.bfloat16).T
    b_p = jnp.pad(bias, (0, d_out_p - d_out)).reshape(1, d_out_p)
    b_p = b_p.astype(jnp.float32)
    return x_p, w_p, b_p


def _linear_resident(x, weight, bias, d_in_p, d_out_p, tm, tn, budget):
    B, d_in = x.shape
    d_out = weight.shape[0]
    B_p = _round_up(B, tm)

    x_p, w_p, b_p = _pad_cast_inputs(x, weight, bias, B_p, d_in_p, d_out_p)
    mb, nb = B_p // tm, d_out_p // tn

    cost = pl.CostEstimate(
        flops=2 * B_p * d_in_p * d_out_p,
        transcendentals=0,
        # x read once per M block, W/bias DMA'd once, output written once.
        bytes_accessed=(2 * B_p * d_in_p + 2 * d_in_p * d_out_p
                        + 4 * d_out_p + 4 * B_p * d_out_p),
    )

    out = pl.pallas_call(
        _linear_resident_kernel,
        out_shape=jax.ShapeDtypeStruct((B_p, d_out_p), x.dtype),
        grid_spec=pltpu.PrefetchScalarGridSpec(
            num_scalar_prefetch=0,
            grid=(mb, nb),
            in_specs=[
                pl.BlockSpec((tm, d_in_p), lambda i, j: (i, 0)),        # x tile
                pl.BlockSpec((d_in_p, d_out_p), lambda i, j: (0, 0)),   # W resident
                pl.BlockSpec((1, d_out_p), lambda i, j: (0, 0)),        # bias resident
            ],
            out_specs=pl.BlockSpec((tm, tn), lambda i, j: (i, j)),
        ),
        compiler_params=pltpu.CompilerParams(
            dimension_semantics=("parallel", "parallel"),
            vmem_limit_bytes=budget,
        ),
        cost_estimate=cost,
    )(x_p, w_p, b_p)

    if (B_p, d_out_p) != (B, d_out):
        out = out[:B, :d_out]
    return out


def _linear_tiled(x, weight, bias, d_in_p, d_out_p, budget):
    B, d_in = x.shape
    d_out = weight.shape[0]

    tm = min(256, _round_up(B, 16))
    tn = 512 if d_out_p % 512 == 0 else (256 if d_out_p % 256 == 0 else 128)
    tn = min(tn, d_out_p)
    tk = (1024 if d_in_p % 1024 == 0 else
          512 if d_in_p % 512 == 0 else
          256 if d_in_p % 256 == 0 else 128)
    tk = min(tk, d_in_p)
    B_p = _round_up(B, tm)

    x_p, w_p, b_p = _pad_cast_inputs(x, weight, bias, B_p, d_in_p, d_out_p)
    mb, nb, kb = B_p // tm, d_out_p // tn, d_in_p // tk

    cost = pl.CostEstimate(
        flops=2 * B_p * d_in_p * d_out_p,
        transcendentals=0,
        # streamed path: x re-read per N block, W re-read per M block.
        bytes_accessed=(2 * B_p * d_in_p * nb + 2 * d_in_p * d_out_p * mb
                        + 4 * d_out_p * mb + 4 * B_p * d_out_p),
    )

    out = pl.pallas_call(
        _linear_tiled_kernel,
        out_shape=jax.ShapeDtypeStruct((B_p, d_out_p), x.dtype),
        grid_spec=pltpu.PrefetchScalarGridSpec(
            num_scalar_prefetch=0,
            grid=(mb, nb, kb),
            in_specs=[
                pl.BlockSpec((tm, tk), lambda i, j, k: (i, k)),   # x
                pl.BlockSpec((tk, tn), lambda i, j, k: (k, j)),   # W (K, N)
                pl.BlockSpec((1, tn), lambda i, j, k: (0, j)),    # bias
            ],
            out_specs=pl.BlockSpec((tm, tn), lambda i, j, k: (i, j)),
            scratch_shapes=[pltpu.VMEM((tm, tn), jnp.float32)],
        ),
        compiler_params=pltpu.CompilerParams(
            dimension_semantics=("parallel", "parallel", "arbitrary"),
            vmem_limit_bytes=budget,
        ),
        cost_estimate=cost,
    )(x_p, w_p, b_p)

    if (B_p, d_out_p) != (B, d_out):
        out = out[:B, :d_out]
    return out


def _pallas_linear(x, weight, bias):
    B, d_in = x.shape
    d_out, d_in_w = weight.shape
    assert d_in == d_in_w and bias.shape == (d_out,)

    d_in_p = _round_up(d_in, 128)
    d_out_p = _round_up(d_out, 128)
    budget = _vmem_budget_bytes()

    # N tile: whole padded d_out when modest, else largest 128-multiple <= 512.
    if d_out_p <= 512:
        tn = d_out_p
    elif d_out_p % 512 == 0:
        tn = 512
    elif d_out_p % 256 == 0:
        tn = 256
    else:
        tn = 128
    nb = d_out_p // tn

    w_bytes = d_in_p * d_out_p * 2          # resident bf16 weight
    b_bytes = d_out_p * 4                   # resident f32 bias

    def fits(tm):
        x_tile = tm * d_in_p * 2 * 2        # bf16 x tile, double-buffered
        o_tile = tm * tn * 4 * 2            # f32 out tile, double-buffered
        return w_bytes + b_bytes + x_tile + o_tile <= budget

    # M tile: as large as possible up to 512, multiple of 16 (bf16 sublanes),
    # shrink for VMEM fit and to keep >= 2 parallel blocks for v7x megacore.
    cands = [512, 256, 128, 64, 32, 16]
    b16 = _round_up(B, 16)
    tm = next((c for c in cands if c <= b16), 16)
    need_two = (nb == 1) and (B >= 256)
    i = cands.index(tm)
    while i < len(cands) - 1 and (not fits(cands[i]) or
                                  (need_two and pl.cdiv(B, cands[i]) < 2)):
        i += 1
    tm = cands[i]

    if fits(tm):
        return _linear_resident(x, weight, bias, d_in_p, d_out_p, tm, tn, budget)
    return _linear_tiled(x, weight, bias, d_in_p, d_out_p, budget)


def mlp_classifier_forward(x, weight, bias, *, force_pallas=False):
    """Equivalent of MLPClassifier.forward: self.lin(x).

    x:      (B, input_dim)           float32
    weight: (output_dim, input_dim)  float32 (PyTorch nn.Linear layout)
    bias:   (output_dim,)            float32
    returns (B, output_dim)          float32
    """
    B, d_in = x.shape
    d_out = weight.shape[0]
    # Below ~one (128,128) MXU output tile of work, launch overhead dominates.
    tiny = (B * d_out < 128 * 128) and (d_in < 512)
    if tiny and not force_pallas:
        return x @ weight.T + bias[None, :]
    return _pallas_linear(x, weight, bias)


def _reference_f32(x, weight, bias):
    return x @ weight.T + bias[None, :]


def _reference_bf16(x, weight, bias):
    xb = x.astype(jnp.bfloat16).astype(jnp.float32)
    wb = weight.astype(jnp.bfloat16).astype(jnp.float32)
    return xb @ wb.T + bias[None, :]


def _check(name, y, x, w, b):
    y_bf16 = _reference_bf16(x, w, b)
    y_f32 = _reference_f32(x, w, b)
    assert y.shape == y_f32.shape, f"{name}: shape mismatch"
    assert jnp.allclose(y, y_bf16, atol=2e-3, rtol=2e-3), f"{name}: bf16-ref mismatch"
    assert jnp.allclose(y, y_f32, atol=6e-2, rtol=6e-2), f"{name}: f32-ref mismatch"


if __name__ == "__main__":
    key = jax.random.PRNGKey(0)
    keys = jax.random.split(key, 9)

    # --- Small shapes consistent with the module (forces the Pallas path) ---
    B, input_dim, output_dim = 8, 32, 16
    bound = 1.0 / jnp.sqrt(jnp.float32(input_dim))
    x = jax.random.normal(keys[0], (B, input_dim), dtype=jnp.float32)
    w = jax.random.uniform(keys[1], (output_dim, input_dim), dtype=jnp.float32,
                           minval=-bound, maxval=bound)
    b = jax.random.uniform(keys[2], (output_dim,), dtype=jnp.float32,
                           minval=-bound, maxval=bound)
    y = jax.block_until_ready(mlp_classifier_forward(x, w, b, force_pallas=True))
    _check("small", y, x, w, b)

    # --- Larger shape: resident weight, 2 M blocks (v7x megacore), K/N pads ---
    B2, d_in2, d_out2 = 512, 640, 384
    bound2 = 1.0 / jnp.sqrt(jnp.float32(d_in2))
    x2 = jax.random.normal(keys[3], (B2, d_in2), dtype=jnp.float32)
    w2 = jax.random.uniform(keys[4], (d_out2, d_in2), dtype=jnp.float32,
                            minval=-bound2, maxval=bound2)
    b2 = jax.random.uniform(keys[5], (d_out2,), dtype=jnp.float32,
                            minval=-bound2, maxval=bound2)
    y2 = jax.block_until_ready(mlp_classifier_forward(x2, w2, b2))
    _check("large", y2, x2, w2, b2)

    # --- Wide head: exercises N-tiled grid + in-kernel pl.ds weight slicing ---
    B3, d_in3, d_out3 = 128, 384, 1024
    bound3 = 1.0 / jnp.sqrt(jnp.float32(d_in3))
    x3 = jax.random.normal(keys[6], (B3, d_in3), dtype=jnp.float32)
    w3 = jax.random.uniform(keys[7], (d_out3, d_in3), dtype=jnp.float32,
                            minval=-bound3, maxval=bound3)
    b3 = jax.random.uniform(keys[8], (d_out3,), dtype=jnp.float32,
                            minval=-bound3, maxval=bound3)
    y3 = jax.block_until_ready(mlp_classifier_forward(x3, w3, b3))
    _check("wide", y3, x3, w3, b3)

    print("KERNEL_OK")
</pallas_src>

<mosaic_0001>
module attributes {stable_mosaic.version = 11 : i64} {
  func.func @_linear_resident_kernel(%arg0: i32, %arg1: i32, %arg2: memref<16x128xbf16, #tpu.memory_space<vmem>>, %arg3: memref<128x128xbf16, #tpu.memory_space<vmem>>, %arg4: memref<1x128xf32, #tpu.memory_space<vmem>>, %arg5: memref<16x128xf32, #tpu.memory_space<vmem>>) attributes {dimension_semantics = [#tpu.dimension_semantics<parallel>, #tpu.dimension_semantics<parallel>], iteration_bounds = array<i64: 1, 1>, scalar_prefetch = 0 : i64, scratch_operands = 0 : i64, tpu.core_type = #tpu.core_type<tc>, window_params = [{transform_indices = @transform_0, window_bounds = array<i64: 16, 128>}, {pipeline_mode = #tpu.pipeline_mode<synchronous>, transform_indices = @transform_1, window_bounds = array<i64: 128, 128>}, {pipeline_mode = #tpu.pipeline_mode<synchronous>, transform_indices = @transform_2, window_bounds = array<i64: 1, 128>}, {transform_indices = @transform_3, window_bounds = array<i64: 16, 128>}]} {
    %c128_i32 = arith.constant 128 : i32
    %0 = arith.muli %arg1, %c128_i32 : i32
    %1 = tpu.assume_multiple %0, 128 : i32
    %c0 = arith.constant 0 : index
    %c0_0 = arith.constant 0 : index
    %2 = vector.load %arg2[%c0, %c0_0] : memref<16x128xbf16, #tpu.memory_space<vmem>>, vector<16x128xbf16>
    %c0_1 = arith.constant 0 : index
    %3 = arith.index_cast %1 : i32 to index
    %4 = vector.load %arg3[%c0_1, %3] : memref<128x128xbf16, #tpu.memory_space<vmem>>, vector<128x128xbf16>
    %cst = arith.constant dense<0.000000e+00> : vector<16x128xf32>
    %5 = tpu.matmul %2, %4, %cst {dimension_numbers = #tpu.dot_dimension_numbers<[1], [0], [0], [1], [0, 0, 1, 1], [], []>} : vector<16x128xbf16>, vector<128x128xbf16>, vector<16x128xf32> -> vector<16x128xf32>
    %c0_2 = arith.constant 0 : index
    %6 = arith.index_cast %1 : i32 to index
    %7 = vector.load %arg4[%c0_2, %6] : memref<1x128xf32, #tpu.memory_space<vmem>>, vector<1x128xf32>
    %8 = vector.broadcast %7 : vector<1x128xf32> to vector<16x128xf32>
    %9 = arith.addf %5, %8 : vector<16x128xf32>
    %c0_3 = arith.constant 0 : index
    %c0_4 = arith.constant 0 : index
    %10 = vector.load %arg5[%c0_3, %c0_4] : memref<16x128xf32, #tpu.memory_space<vmem>>, vector<16x128xf32>
    tpu.vector_store %arg5[%c0_3, %c0_4], %9 {strides = array<i32>} : memref<16x128xf32, #tpu.memory_space<vmem>>, vector<16x128xf32>,
    return
  }
  func.func @transform_0(%arg0: i32, %arg1: i32) -> (i32, i32) {
    %c0_i32 = arith.constant 0 : i32
    %c0_i32_0 = arith.constant 0 : i32
    return %arg0, %c0_i32 : i32, i32
  }
  func.func @transform_1(%arg0: i32, %arg1: i32) -> (i32, i32) {
    %c0_i32 = arith.constant 0 : i32
    %c0_i32_0 = arith.constant 0 : i32
    %c0_i32_1 = arith.constant 0 : i32
    return %c0_i32, %c0_i32_0 : i32, i32
  }
  func.func @transform_2(%arg0: i32, %arg1: i32) -> (i32, i32) {
    %c0_i32 = arith.constant 0 : i32
    %c0_i32_0 = arith.constant 0 : i32
    %c0_i32_1 = arith.constant 0 : i32
    return %c0_i32, %c0_i32_0 : i32, i32
  }
  func.func @transform_3(%arg0: i32, %arg1: i32) -> (i32, i32) {
    %c0_i32 = arith.constant 0 : i32
    return %arg0, %arg1 : i32, i32
  }
}

</mosaic_0001>

<llo_original>
// kernel: tpu_custom_call.1
$region0: #{tpu_custom_call.1}
  #allocation0 [shape = 'u32[]', space=smem, size = 0x4, offset = 0x4, fixed_abs, tag = 'smem constant byte address 0x4 - core index']
  #allocation1 [shape = 'u32[144,128]{1,0:T(1,128)}', space=vmem, size = 0x12000, scoped, tag = 'internal scratch']
  %s0 = inlined_call_operand.hbm [shape: bf16[16,128], index: 0, kind: input, shape index: {}]
  %s1 = inlined_call_operand.hbm [shape: bf16[128,128], index: 1, kind: input, shape index: {}]
  %s2 = inlined_call_operand.vmem [shape: f32[1,128], index: 2, kind: input, shape index: {}]
  %s3 = inlined_call_operand.hbm [shape: f32[16,128], index: 3, kind: output, shape index: {}]
  %s4 = sld [smem:[#allocation0]]
  $region30: #{tpu_custom_call.1} parent=0
    _
  %s6 = ssub.s32 1, %s4
  %s7 = scalar_select 0, %s6, %s4
  $region1: #{tpu_custom_call.1} parent=0
    #allocation2 [shape = 'u8[4096]{0}', space=vmem, size = 0x1000, scoped, tag = 'input window, operand 0, single buffered']
    #allocation3 [shape = 's32[1]{0}', space=sflag, size = 0x4, scoped, tag = 'scoped memory for tpu_custom_call.1']
    #allocation4 [shape = 's32[1]{0}', space=sflag, size = 0x4, scoped, tag = 'scoped memory for tpu_custom_call.1']
    #allocation5 [shape = 'u8[32768]{0}', space=vmem, size = 0x8000, scoped, tag = 'input window, operand 1, single buffered']
    #allocation6 [shape = 's32[1]{0}', space=sflag, size = 0x4, scoped, tag = 'scoped memory for tpu_custom_call.1']
    #allocation7 [shape = 'u8[8192]{0}', space=vmem, size = 0x2000, scoped, tag = 'output window, operand 0, single buffered']
    %8 = vsyncpa [#allocation3], 0
    %9 = vsyncpa [#allocation6], 0
    %10 = vsyncpa [#allocation4], 0
    // Predicated region
    $region2: #{tpu_custom_call.1} parent=1 // pred_check
      _
    $region3: #{tpu_custom_call.1} parent=1 // pred_check_branch
      %12 = sbr.rel (0) target = $region5
    $region4: #{tpu_custom_call.1} parent=1 // pred_region
      %s14 = ssub.s32 128, 128
      %15 = vsyncadd [#allocation3], %s14
      %s16 = sshll.u32 [#allocation2], 4
      %s17 = int_to_ptr.vmem [resolvable:$true] %s16
      %22 = dma.hbm_to_vmem [thread:$0]  %s0, 128, %s17, [#allocation3], 64, 64, 4
    $region5: #{tpu_custom_call.1} parent=1 // pred_fallthru
      _
    // Predicated region
    $region6: #{tpu_custom_call.1} parent=1 // pred_check
      _
    $region7: #{tpu_custom_call.1} parent=1 // pred_check_branch
      %24 = sbr.rel (0) target = $region9
    $region8: #{tpu_custom_call.1} parent=1 // pred_region
      %s26 = ssub.s32 1024, 1024
      %27 = vsyncadd [#allocation6], %s26
      %s28 = sshll.u32 [#allocation5], 4
      %s29 = int_to_ptr.vmem [resolvable:$true] %s28
      %34 = dma.hbm_to_vmem [thread:$0]  %s1, 1024, %s29, [#allocation6], 64, 64, 4
    $region9: #{tpu_custom_call.1} parent=1 // pred_fallthru
      _
    // Predicated region
    $region10: #{tpu_custom_call.1} parent=1 // pred_check
      _
    $region11: #{tpu_custom_call.1} parent=1 // pred_check_branch
      %36 = sbr.rel (0) target = $region13
    $region12: #{tpu_custom_call.1} parent=1 // pred_region
      _
    $region13: #{tpu_custom_call.1} parent=1 // pred_fallthru
      _
    // Predicated region
    $region14: #{tpu_custom_call.1} parent=1 // pred_check
      _
    $region15: #{tpu_custom_call.1} parent=1 // pred_check_branch
      %38 = sbr.rel (0) target = $region17
    $region16: #{tpu_custom_call.1} parent=1 // pred_region
      %39 = dma.done [#allocation3], 128
    $region17: #{tpu_custom_call.1} parent=1 // pred_fallthru
      _
    // Predicated region
    $region18: #{tpu_custom_call.1} parent=1 // pred_check
      _
    $region19: #{tpu_custom_call.1} parent=1 // pred_check_branch
      %41 = sbr.rel (0) target = $region21
    $region20: #{tpu_custom_call.1} parent=1 // pred_region
      %42 = dma.done [#allocation6], 1024
    $region21: #{tpu_custom_call.1} parent=1 // pred_fallthru
      _
    %s44 = smul.u32 0, 128
    %v45 = vld [vmem:[#allocation2] sm:$0xf]
    %v46 = vld [vmem:[#allocation2 + $0x4] sm:$0xf]
    %s47 = sshra.s32 %s44, 7
    %s48 = sand.u32 %s44, 127
    %s49 = smul.addr %s47, 4
    %s50 = scalar_lea.vmem [#allocation5], %s49
    %v51 = vld [vmem:[%s50] sm:$0xf]
    %v52 = vld [vmem:[%s50 + $0x4] sm:$0xf]
    %v53 = vld [vmem:[%s50 + $0x8] sm:$0xf]
    %v54 = vld [vmem:[%s50 + $0xc] sm:$0xf]
    %v55 = vld [vmem:[%s50 + $0x10] sm:$0xf]
    %v56 = vld [vmem:[%s50 + $0x14] sm:$0xf]
    %v57 = vld [vmem:[%s50 + $0x18] sm:$0xf]
    %v58 = vld [vmem:[%s50 + $0x1c] sm:$0xf]
    %v59 = vld [vmem:[%s50 + $0x20] sm:$0xf]
    %v60 = vld [vmem:[%s50 + $0x24] sm:$0xf]
    %v61 = vld [vmem:[%s50 + $0x28] sm:$0xf]
    %v62 = vld [vmem:[%s50 + $0x2c] sm:$0xf]
    %v63 = vld [vmem:[%s50 + $0x30] sm:$0xf]
    %v64 = vld [vmem:[%s50 + $0x34] sm:$0xf]
    %v65 = vld [vmem:[%s50 + $0x38] sm:$0xf]
    %v66 = vld [vmem:[%s50 + $0x3c] sm:$0xf]
    %s67 = scalar_lea.vmem %s2, %s47
    %v68 = vld [vmem:[%s67] sm:$0x1]
    %v70 = vlaneseq
    %v71 = vshrl.u32 %v70, 7
    %v72 = vsub.s32 0, %v71
    %v73 = vrot.slane %v68, %v72
    %v77 = vunpack.c.l.b16 %v45
    %v78 = vunpack.c.l.b16 %v46
    %v79 = vpack.c.b16 %v78, %v77
    %v97 = vunpack.c.l.b16 %v51
    %v98 = vunpack.c.l.b16 %v52
    %v99 = vunpack.c.l.b16 %v53
    %v100 = vunpack.c.l.b16 %v54
    %v101 = vunpack.c.l.b16 %v55
    %v102 = vunpack.c.l.b16 %v56
    %v103 = vunpack.c.l.b16 %v57
    %v104 = vunpack.c.l.b16 %v58
    %v105 = vunpack.c.l.b16 %v59
    %v106 = vunpack.c.l.b16 %v60
    %v107 = vunpack.c.l.b16 %v61
    %v108 = vunpack.c.l.b16 %v62
    %v109 = vunpack.c.l.b16 %v63
    %v110 = vunpack.c.l.b16 %v64
    %v111 = vunpack.c.l.b16 %v65
    %v112 = vunpack.c.l.b16 %v66
    %v113 = vpack.c.b16 %v98, %v97
    %v114 = vpack.c.b16 %v100, %v99
    %v115 = vpack.c.b16 %v102, %v101
    %v116 = vpack.c.b16 %v104, %v103
    %v117 = vpack.c.b16 %v106, %v105
    %v118 = vpack.c.b16 %v108, %v107
    %v119 = vpack.c.b16 %v110, %v109
    %v120 = vpack.c.b16 %v112, %v111
    %129 = vmatprep.subr.bf16.mxu0 0
    %130 = vmatpush1.bf16.msra.mxu0 %v120
    %131 = vmatprep.subr.bf16.mxu0 0
    %132 = vmatpush1.bf16.msra.mxu0 %v119
    %133 = vmatprep.subr.bf16.mxu0 0
    %134 = vmatpush1.bf16.msra.mxu0 %v118
    %135 = vmatprep.subr.bf16.mxu0 0
    %136 = vmatpush1.bf16.msra.mxu0 %v117
    %137 = vmatprep.subr.bf16.mxu0 0
    %138 = vmatpush1.bf16.msra.mxu0 %v116
    %139 = vmatprep.subr.bf16.mxu0 0
    %140 = vmatpush1.bf16.msra.mxu0 %v115
    %141 = vmatprep.subr.bf16.mxu0 0
    %142 = vmatpush1.bf16.msra.mxu0 %v114
    %143 = vmatprep.subr.bf16.mxu0 0
    %144 = vmatpush1.bf16.msra.mxu0 %v113
    %145 = vmatprep.subr.bf16.mxu0 0
    %146 = vmatpush2.bf16.msra.mxu0 0
    %147 = vmatprep.subr.bf16.mxu0 0
    %148 = vmatpush2.bf16.msra.mxu0 0
    %149 = vmatprep.subr.bf16.mxu0 0
    %150 = vmatpush2.bf16.msra.mxu0 0
    %151 = vmatprep.subr.bf16.mxu0 0
    %152 = vmatpush2.bf16.msra.mxu0 0
    %153 = vmatprep.subr.bf16.mxu0 0
    %154 = vmatpush2.bf16.msra.mxu0 0
    %155 = vmatprep.subr.bf16.mxu0 0
    %156 = vmatpush2.bf16.msra.mxu0 0
    %157 = vmatprep.subr.bf16.mxu0 0
    %158 = vmatpush2.bf16.msra.mxu0 0
    %159 = vmatprep.subr.bf16.mxu0 0
    %160 = vmatpush2.bf16.msra.mxu0 0
    %161 = vmatprep.mubr.bf16.mxu0 0
    %162 = vmatmul.mubr.bf16.gmra.mxu0 %v79
    %v163 = vpop.f32.mrf.mxu0
    %v164 = vadd.f32 %v73, %v163
    %v165 = vpop.f32.mrf.mxu0
    %v166 = vpop.f32.mrf.mxu0
    %v167 = vadd.f32 %v73, %v166
    %v168 = vpop.f32.mrf.mxu0
    %169 = vdwg.mxu0
    %170 = vst [vmem:[#allocation7] sm:$0xff] %v164
    %171 = vst [vmem:[#allocation7 + $0x8] sm:$0xff] %v167
    // Predicated region
    $region22: #{tpu_custom_call.1} parent=1 // pred_check
      _
    $region23: #{tpu_custom_call.1} parent=1 // pred_check_branch
      %173 = sbr.rel (0) target = $region25
    $region24: #{tpu_custom_call.1} parent=1 // pred_region
      %s175 = ssub.s32 256, 256
      %176 = vsyncadd [#allocation4], %s175
      %s177 = sshll.u32 [#allocation7], 4
      %s178 = int_to_ptr.vmem [resolvable:$true] %s177
      %183 = dma.vmem_to_hbm [thread:$0]  %s178, 256, %s3, [#allocation4], 128, 128, 8
    $region25: #{tpu_custom_call.1} parent=1 // pred_fallthru
      _
    // Predicated region
    $region26: #{tpu_custom_call.1} parent=1 // pred_check
      _
    $region27: #{tpu_custom_call.1} parent=1 // pred_check_branch
      %185 = sbr.rel (0) target = $region29
    $region28: #{tpu_custom_call.1} parent=1 // pred_region
      %186 = dma.done [#allocation4], 256
    $region29: #{tpu_custom_call.1} parent=1 // pred_fallthru
      _
    %187 = vsyncpa [#allocation3], 1
    %188 = vsyncpa [#allocation6], 1
    %189 = vsyncpa [#allocation4], 1

</llo_original>
